<compile_context>
chip_gen: v5e
topology: v5e:2x2
jax: 0.10.0
libtpu: 0.0.40
codegen_flags: <defaults>
</compile_context>

<pallas_src>
import functools

import jax
import jax.numpy as jnp
from jax.experimental import pallas as pl
from jax.experimental.pallas import tpu as pltpu

HIDDEN = 128


def mlp_kernel(x_ref,
               w1_ref, b1_ref,
               w2_ref, b2_ref,
               w3_ref, b3_ref,
               w4_ref, b4_ref,
               o_ref):
    # Layer 1: Linear(input_dims, 128) + ReLU.  bf16 operands -> MXU, f32 accumulation.
    h = jnp.dot(x_ref[...], w1_ref[...], preferred_element_type=jnp.float32)
    h = jnp.maximum(h + b1_ref[...], 0.0)
    # Layer 2: Linear(128, 128) + ReLU
    h = jnp.dot(h.astype(jnp.bfloat16), w2_ref[...], preferred_element_type=jnp.float32)
    h = jnp.maximum(h + b2_ref[...], 0.0)
    # Layer 3: Linear(128, 128) + ReLU
    h = jnp.dot(h.astype(jnp.bfloat16), w3_ref[...], preferred_element_type=jnp.float32)
    h = jnp.maximum(h + b3_ref[...], 0.0)
    # Layer 4: Linear(128, output_dims_padded), no activation (logits).
    logits = jnp.dot(h.astype(jnp.bfloat16), w4_ref[...],
                     preferred_element_type=jnp.float32) + b4_ref[...]
    o_ref[...] = logits.astype(o_ref.dtype)


def _round_up(n, m):
    return ((n + m - 1) // m) * m


def _choose_tile_b(batch, tile_b):
    # Multiple of 16 (bf16 sublane packing), no bigger than the (padded) batch.
    tb = max(16, min(_round_up(tile_b, 16), _round_up(batch, 16)))
    # Keep >= 2 grid steps when the batch allows it: v7x has 2 TensorCores and only
    # "parallel" grid steps get sharded across them.
    if _round_up(batch, tb) // tb < 2 and batch > 16:
        tb = max(16, _round_up((batch + 1) // 2, 16))
    return tb


@functools.partial(jax.jit, static_argnames=("tile_b",))
def mlp_forward(x, params, tile_b=512):
    """x: (B, input_dims) float32. params: dict of (in,out) f32 weights + (1,out) f32 biases.

    Returns float32 logits of shape (B, output_dims)."""
    B, D_in = x.shape
    D_out = params["w4"].shape[1]

    tb = _choose_tile_b(B, tile_b)
    B_pad = _round_up(B, tb)
    D_out_pad = _round_up(max(D_out, 128), 128)  # lane-dense output -> unmasked stores

    # Pad the batch instead of forcing callers onto tiny tiles; padded rows are sliced off.
    x_p = x if B_pad == B else jnp.pad(x, ((0, B_pad - B), (0, 0)))
    x_bf = x_p.astype(jnp.bfloat16)

    # bf16 weights for MXU throughput; biases stay f32 (bias-add / ReLU run in f32).
    w1 = params["w1"].astype(jnp.bfloat16)
    w2 = params["w2"].astype(jnp.bfloat16)
    w3 = params["w3"].astype(jnp.bfloat16)
    w4 = jnp.pad(params["w4"], ((0, 0), (0, D_out_pad - D_out))).astype(jnp.bfloat16)
    b1, b2, b3 = params["b1"], params["b2"], params["b3"]
    b4 = jnp.pad(params["b4"], ((0, 0), (0, D_out_pad - D_out)))

    n_tiles = B_pad // tb

    # Whole-array, grid-invariant blocks for weights/biases (DMA'd once, VMEM-resident).
    const_spec = lambda a: pl.BlockSpec(a.shape, lambda i: (0, 0))

    flops = 2 * B_pad * (D_in * HIDDEN + 2 * HIDDEN * HIDDEN + HIDDEN * D_out_pad)
    bytes_accessed = (x_bf.size * 2
                      + (w1.size + w2.size + w3.size + w4.size) * 2
                      + (b1.size + b2.size + b3.size + b4.size) * 4
                      + B_pad * D_out_pad * 4)

    out = pl.pallas_call(
        mlp_kernel,
        out_shape=jax.ShapeDtypeStruct((B_pad, D_out_pad), jnp.float32),
        grid_spec=pltpu.PrefetchScalarGridSpec(
            num_scalar_prefetch=0,
            grid=(n_tiles,),
            in_specs=[
                pl.BlockSpec((tb, D_in), lambda i: (i, 0)),  # x tile
                const_spec(w1), const_spec(b1),
                const_spec(w2), const_spec(b2),
                const_spec(w3), const_spec(b3),
                const_spec(w4), const_spec(b4),
            ],
            out_specs=pl.BlockSpec((tb, D_out_pad), lambda i: (i, 0)),
        ),
        compiler_params=pltpu.CompilerParams(
            dimension_semantics=("parallel",),
            # Headroom for large tile_b sweeps; comfortably below v7x's 64 MiB physical VMEM.
            vmem_limit_bytes=48 * 1024 * 1024,
        ),
        cost_estimate=pl.CostEstimate(
            flops=flops, transcendentals=0, bytes_accessed=bytes_accessed),
    )(x_bf, w1, b1, w2, b2, w3, b3, w4, b4)

    return out[:B, :D_out]


def init_params(key, input_dims, output_dims, hidden=HIDDEN):
    """Deterministic init mirroring nn.Linear default (uniform(-1/sqrt(fan_in), 1/sqrt(fan_in))).
    Weights stored already-transposed as (in, out); biases as (1, out) for 2-D VMEM layout."""
    dims = [(input_dims, hidden), (hidden, hidden), (hidden, hidden), (hidden, output_dims)]
    params = {}
    for idx, (fan_in, fan_out) in enumerate(dims, start=1):
        key, kw, kb = jax.random.split(key, 3)
        bound = 1.0 / jnp.sqrt(jnp.float32(fan_in))
        params[f"w{idx}"] = jax.random.uniform(
            kw, (fan_in, fan_out), jnp.float32, minval=-bound, maxval=bound)
        params[f"b{idx}"] = jax.random.uniform(
            kb, (1, fan_out), jnp.float32, minval=-bound, maxval=bound)
    return params


def reference_forward(x, params):
    h = x
    for idx in range(1, 4):
        h = jnp.maximum(h @ params[f"w{idx}"] + params[f"b{idx}"], 0.0)
    return h @ params["w4"] + params["b4"]


if __name__ == "__main__":
    key = jax.random.PRNGKey(0)
    B, input_dims, output_dims = 8, 32, 16

    key, kx = jax.random.split(key)
    # obs arrives as (B, input_dims); forward() flattens obs.view(B, -1) — already flat here.
    obs = jax.random.normal(kx, (B, input_dims), jnp.float32)

    params = init_params(key, input_dims, output_dims)

    logits = mlp_forward(obs, params)
    jax.block_until_ready(logits)

    ref = reference_forward(obs, params)
    assert logits.shape == (B, output_dims)
    # bf16 MXU operands (f32 accumulation): loosened tolerance vs the pure-f32 reference.
    assert jnp.allclose(logits, ref, atol=5e-2, rtol=5e-2)

    # forward() returns (logits, state); state passes through unchanged (None here).
    state = None
    print("KERNEL_OK")
</pallas_src>

<mosaic_0001>
module attributes {stable_mosaic.version = 11 : i64} {
  func.func @mlp_kernel(%arg0: i32, %arg1: memref<16x32xbf16, #tpu.memory_space<vmem>>, %arg2: memref<32x128xbf16, #tpu.memory_space<vmem>>, %arg3: memref<1x128xf32, #tpu.memory_space<vmem>>, %arg4: memref<128x128xbf16, #tpu.memory_space<vmem>>, %arg5: memref<1x128xf32, #tpu.memory_space<vmem>>, %arg6: memref<128x128xbf16, #tpu.memory_space<vmem>>, %arg7: memref<1x128xf32, #tpu.memory_space<vmem>>, %arg8: memref<128x128xbf16, #tpu.memory_space<vmem>>, %arg9: memref<1x128xf32, #tpu.memory_space<vmem>>, %arg10: memref<16x128xf32, #tpu.memory_space<vmem>>) attributes {dimension_semantics = [#tpu.dimension_semantics<parallel>], iteration_bounds = array<i64: 1>, scalar_prefetch = 0 : i64, scratch_operands = 0 : i64, tpu.core_type = #tpu.core_type<tc>, window_params = [{transform_indices = @transform_0, window_bounds = array<i64: 16, 32>}, {pipeline_mode = #tpu.pipeline_mode<synchronous>, transform_indices = @transform_1, window_bounds = array<i64: 32, 128>}, {pipeline_mode = #tpu.pipeline_mode<synchronous>, transform_indices = @transform_2, window_bounds = array<i64: 1, 128>}, {pipeline_mode = #tpu.pipeline_mode<synchronous>, transform_indices = @transform_3, window_bounds = array<i64: 128, 128>}, {pipeline_mode = #tpu.pipeline_mode<synchronous>, transform_indices = @transform_4, window_bounds = array<i64: 1, 128>}, {pipeline_mode = #tpu.pipeline_mode<synchronous>, transform_indices = @transform_5, window_bounds = array<i64: 128, 128>}, {pipeline_mode = #tpu.pipeline_mode<synchronous>, transform_indices = @transform_6, window_bounds = array<i64: 1, 128>}, {pipeline_mode = #tpu.pipeline_mode<synchronous>, transform_indices = @transform_7, window_bounds = array<i64: 128, 128>}, {pipeline_mode = #tpu.pipeline_mode<synchronous>, transform_indices = @transform_8, window_bounds = array<i64: 1, 128>}, {transform_indices = @transform_9, window_bounds = array<i64: 16, 128>}]} {
    %c0 = arith.constant 0 : index
    %c0_0 = arith.constant 0 : index
    %0 = vector.load %arg1[%c0, %c0_0] : memref<16x32xbf16, #tpu.memory_space<vmem>>, vector<16x32xbf16>
    %c0_1 = arith.constant 0 : index
    %c0_2 = arith.constant 0 : index
    %1 = vector.load %arg2[%c0_1, %c0_2] : memref<32x128xbf16, #tpu.memory_space<vmem>>, vector<32x128xbf16>
    %cst = arith.constant dense<0.000000e+00> : vector<16x128xf32>
    %2 = tpu.matmul %0, %1, %cst {dimension_numbers = #tpu.dot_dimension_numbers<[1], [0], [0], [1], [0, 0, 1, 1], [], []>} : vector<16x32xbf16>, vector<32x128xbf16>, vector<16x128xf32> -> vector<16x128xf32>
    %c0_3 = arith.constant 0 : index
    %c0_4 = arith.constant 0 : index
    %3 = vector.load %arg3[%c0_3, %c0_4] : memref<1x128xf32, #tpu.memory_space<vmem>>, vector<1x128xf32>
    %4 = vector.broadcast %3 : vector<1x128xf32> to vector<16x128xf32>
    %5 = arith.addf %2, %4 : vector<16x128xf32>
    %cst_5 = arith.constant 0.000000e+00 : f32
    %6 = vector.broadcast %cst_5 : f32 to vector<16x128xf32>
    %7 = arith.maximumf %5, %6 : vector<16x128xf32>
    %8 = arith.truncf %7 : vector<16x128xf32> to vector<16x128xbf16>
    %c0_6 = arith.constant 0 : index
    %c0_7 = arith.constant 0 : index
    %9 = vector.load %arg4[%c0_6, %c0_7] : memref<128x128xbf16, #tpu.memory_space<vmem>>, vector<128x128xbf16>
    %cst_8 = arith.constant dense<0.000000e+00> : vector<16x128xf32>
    %10 = tpu.matmul %8, %9, %cst_8 {dimension_numbers = #tpu.dot_dimension_numbers<[1], [0], [0], [1], [0, 0, 1, 1], [], []>} : vector<16x128xbf16>, vector<128x128xbf16>, vector<16x128xf32> -> vector<16x128xf32>
    %c0_9 = arith.constant 0 : index
    %c0_10 = arith.constant 0 : index
    %11 = vector.load %arg5[%c0_9, %c0_10] : memref<1x128xf32, #tpu.memory_space<vmem>>, vector<1x128xf32>
    %12 = vector.broadcast %11 : vector<1x128xf32> to vector<16x128xf32>
    %13 = arith.addf %10, %12 : vector<16x128xf32>
    %cst_11 = arith.constant 0.000000e+00 : f32
    %14 = vector.broadcast %cst_11 : f32 to vector<16x128xf32>
    %15 = arith.maximumf %13, %14 : vector<16x128xf32>
    %16 = arith.truncf %15 : vector<16x128xf32> to vector<16x128xbf16>
    %c0_12 = arith.constant 0 : index
    %c0_13 = arith.constant 0 : index
    %17 = vector.load %arg6[%c0_12, %c0_13] : memref<128x128xbf16, #tpu.memory_space<vmem>>, vector<128x128xbf16>
    %cst_14 = arith.constant dense<0.000000e+00> : vector<16x128xf32>
    %18 = tpu.matmul %16, %17, %cst_14 {dimension_numbers = #tpu.dot_dimension_numbers<[1], [0], [0], [1], [0, 0, 1, 1], [], []>} : vector<16x128xbf16>, vector<128x128xbf16>, vector<16x128xf32> -> vector<16x128xf32>
    %c0_15 = arith.constant 0 : index
    %c0_16 = arith.constant 0 : index
    %19 = vector.load %arg7[%c0_15, %c0_16] : memref<1x128xf32, #tpu.memory_space<vmem>>, vector<1x128xf32>
    %20 = vector.broadcast %19 : vector<1x128xf32> to vector<16x128xf32>
    %21 = arith.addf %18, %20 : vector<16x128xf32>
    %cst_17 = arith.constant 0.000000e+00 : f32
    %22 = vector.broadcast %cst_17 : f32 to vector<16x128xf32>
    %23 = arith.maximumf %21, %22 : vector<16x128xf32>
    %24 = arith.truncf %23 : vector<16x128xf32> to vector<16x128xbf16>
    %c0_18 = arith.constant 0 : index
    %c0_19 = arith.constant 0 : index
    %25 = vector.load %arg8[%c0_18, %c0_19] : memref<128x128xbf16, #tpu.memory_space<vmem>>, vector<128x128xbf16>
    %cst_20 = arith.constant dense<0.000000e+00> : vector<16x128xf32>
    %26 = tpu.matmul %24, %25, %cst_20 {dimension_numbers = #tpu.dot_dimension_numbers<[1], [0], [0], [1], [0, 0, 1, 1], [], []>} : vector<16x128xbf16>, vector<128x128xbf16>, vector<16x128xf32> -> vector<16x128xf32>
    %c0_21 = arith.constant 0 : index
    %c0_22 = arith.constant 0 : index
    %27 = vector.load %arg9[%c0_21, %c0_22] : memref<1x128xf32, #tpu.memory_space<vmem>>, vector<1x128xf32>
    %28 = vector.broadcast %27 : vector<1x128xf32> to vector<16x128xf32>
    %29 = arith.addf %26, %28 : vector<16x128xf32>
    %c0_23 = arith.constant 0 : index
    %c0_24 = arith.constant 0 : index
    %30 = vector.load %arg10[%c0_23, %c0_24] : memref<16x128xf32, #tpu.memory_space<vmem>>, vector<16x128xf32>
    tpu.vector_store %arg10[%c0_23, %c0_24], %29 {strides = array<i32>} : memref<16x128xf32, #tpu.memory_space<vmem>>, vector<16x128xf32>,
    return
  }
  func.func @transform_0(%arg0: i32) -> (i32, i32) {
    %c0_i32 = arith.constant 0 : i32
    %c0_i32_0 = arith.constant 0 : i32
    return %arg0, %c0_i32 : i32, i32
  }
  func.func @transform_1(%arg0: i32) -> (i32, i32) {
    %c0_i32 = arith.constant 0 : i32
    %c0_i32_0 = arith.constant 0 : i32
    %c0_i32_1 = arith.constant 0 : i32
    return %c0_i32, %c0_i32_0 : i32, i32
  }
  func.func @transform_2(%arg0: i32) -> (i32, i32) {
    %c0_i32 = arith.constant 0 : i32
    %c0_i32_0 = arith.constant 0 : i32
    %c0_i32_1 = arith.constant 0 : i32
    return %c0_i32, %c0_i32_0 : i32, i32
  }
  func.func @transform_3(%arg0: i32) -> (i32, i32) {
    %c0_i32 = arith.constant 0 : i32
    %c0_i32_0 = arith.constant 0 : i32
    %c0_i32_1 = arith.constant 0 : i32
    return %c0_i32, %c0_i32_0 : i32, i32
  }
  func.func @transform_4(%arg0: i32) -> (i32, i32) {
    %c0_i32 = arith.constant 0 : i32
    %c0_i32_0 = arith.constant 0 : i32
    %c0_i32_1 = arith.constant 0 : i32
    return %c0_i32, %c0_i32_0 : i32, i32
  }
  func.func @transform_5(%arg0: i32) -> (i32, i32) {
    %c0_i32 = arith.constant 0 : i32
    %c0_i32_0 = arith.constant 0 : i32
    %c0_i32_1 = arith.constant 0 : i32
    return %c0_i32, %c0_i32_0 : i32, i32
  }
  func.func @transform_6(%arg0: i32) -> (i32, i32) {
    %c0_i32 = arith.constant 0 : i32
    %c0_i32_0 = arith.constant 0 : i32
    %c0_i32_1 = arith.constant 0 : i32
    return %c0_i32, %c0_i32_0 : i32, i32
  }
  func.func @transform_7(%arg0: i32) -> (i32, i32) {
    %c0_i32 = arith.constant 0 : i32
    %c0_i32_0 = arith.constant 0 : i32
    %c0_i32_1 = arith.constant 0 : i32
    return %c0_i32, %c0_i32_0 : i32, i32
  }
  func.func @transform_8(%arg0: i32) -> (i32, i32) {
    %c0_i32 = arith.constant 0 : i32
    %c0_i32_0 = arith.constant 0 : i32
    %c0_i32_1 = arith.constant 0 : i32
    return %c0_i32, %c0_i32_0 : i32, i32
  }
  func.func @transform_9(%arg0: i32) -> (i32, i32) {
    %c0_i32 = arith.constant 0 : i32
    %c0_i32_0 = arith.constant 0 : i32
    return %arg0, %c0_i32 : i32, i32
  }
}

</mosaic_0001>

<llo_original>
// kernel: mlp_forward.1
$region0: #{mlp_forward.1}
  #allocation0 [shape = 'u32[]', space=smem, size = 0x4, offset = 0x4, fixed_abs, tag = 'smem constant byte address 0x4 - core index']
  #allocation1 [shape = 'u32[72,128]{1,0:T(1,128)}', space=vmem, size = 0x9000, scoped, tag = 'internal scratch']
  %s0 = inlined_call_operand.vmem [shape: bf16[16,32], index: 0, kind: input, shape index: {}]
  %s1 = inlined_call_operand.vmem [shape: bf16[32,128], index: 1, kind: input, shape index: {}]
  %s2 = inlined_call_operand.vmem [shape: f32[1,128], index: 2, kind: input, shape index: {}]
  %s3 = inlined_call_operand.vmem [shape: bf16[128,128], index: 3, kind: input, shape index: {}]
  %s4 = inlined_call_operand.vmem [shape: f32[1,128], index: 4, kind: input, shape index: {}]
  %s5 = inlined_call_operand.vmem [shape: bf16[128,128], index: 5, kind: input, shape index: {}]
  %s6 = inlined_call_operand.vmem [shape: f32[1,128], index: 6, kind: input, shape index: {}]
  %s7 = inlined_call_operand.vmem [shape: bf16[128,128], index: 7, kind: input, shape index: {}]
  %s8 = inlined_call_operand.vmem [shape: f32[1,128], index: 8, kind: input, shape index: {}]
  %s9 = inlined_call_operand.vmem [shape: f32[16,128], index: 9, kind: output, shape index: {}]
  %s10 = sld [smem:[#allocation0]]
  $region46: #{mlp_forward.1} parent=0
    _
  %s12 = ssub.s32 1, %s10
  %s13 = scalar_select 0, %s12, %s10
  // Predicated region
  $region2: #{mlp_forward.1} parent=0 // pred_check
    _
  $region3: #{mlp_forward.1} parent=0 // pred_check_branch
    %15 = sbr.rel (0) target = $region5
  $region4: #{mlp_forward.1} parent=0 // pred_region
    _
  $region5: #{mlp_forward.1} parent=0 // pred_fallthru
    _
  // Predicated region
  $region6: #{mlp_forward.1} parent=0 // pred_check
    _
  $region7: #{mlp_forward.1} parent=0 // pred_check_branch
    %17 = sbr.rel (0) target = $region9
  $region8: #{mlp_forward.1} parent=0 // pred_region
    _
  $region9: #{mlp_forward.1} parent=0 // pred_fallthru
    _
  // Predicated region
  $region10: #{mlp_forward.1} parent=0 // pred_check
    _
  $region11: #{mlp_forward.1} parent=0 // pred_check_branch
    %19 = sbr.rel (0) target = $region13
  $region12: #{mlp_forward.1} parent=0 // pred_region
    _
  $region13: #{mlp_forward.1} parent=0 // pred_fallthru
    _
  // Predicated region
  $region14: #{mlp_forward.1} parent=0 // pred_check
    _
  $region15: #{mlp_forward.1} parent=0 // pred_check_branch
    %21 = sbr.rel (0) target = $region17
  $region16: #{mlp_forward.1} parent=0 // pred_region
    _
  $region17: #{mlp_forward.1} parent=0 // pred_fallthru
    _
  // Predicated region
  $region18: #{mlp_forward.1} parent=0 // pred_check
    _
  $region19: #{mlp_forward.1} parent=0 // pred_check_branch
    %23 = sbr.rel (0) target = $region21
  $region20: #{mlp_forward.1} parent=0 // pred_region
    _
  $region21: #{mlp_forward.1} parent=0 // pred_fallthru
    _
  // Predicated region
  $region22: #{mlp_forward.1} parent=0 // pred_check
    _
  $region23: #{mlp_forward.1} parent=0 // pred_check_branch
    %25 = sbr.rel (0) target = $region25
  $region24: #{mlp_forward.1} parent=0 // pred_region
    _
  $region25: #{mlp_forward.1} parent=0 // pred_fallthru
    _
  // Predicated region
  $region26: #{mlp_forward.1} parent=0 // pred_check
    _
  $region27: #{mlp_forward.1} parent=0 // pred_check_branch
    %27 = sbr.rel (0) target = $region29
  $region28: #{mlp_forward.1} parent=0 // pred_region
    _
  $region29: #{mlp_forward.1} parent=0 // pred_fallthru
    _
  // Predicated region
  $region30: #{mlp_forward.1} parent=0 // pred_check
    _
  $region31: #{mlp_forward.1} parent=0 // pred_check_branch
    %29 = sbr.rel (0) target = $region33
  $region32: #{mlp_forward.1} parent=0 // pred_region
    _
  $region33: #{mlp_forward.1} parent=0 // pred_fallthru
    _
  // Predicated region
  $region34: #{mlp_forward.1} parent=0 // pred_check
    _
  $region35: #{mlp_forward.1} parent=0 // pred_check_branch
    %31 = sbr.rel (0) target = $region37
  $region36: #{mlp_forward.1} parent=0 // pred_region
    _
  $region37: #{mlp_forward.1} parent=0 // pred_fallthru
    _
  %v33 = vld [vmem:[%s0] sm:$0xf]
  %v34 = vld [vmem:[%s0 + $0x4] sm:$0xf]
  %v35 = vld [vmem:[%s1] sm:$0xf]
  %v36 = vld [vmem:[%s1 + $0x4] sm:$0xf]
  %v37 = vld [vmem:[%s1 + $0x8] sm:$0xf]
  %v38 = vld [vmem:[%s1 + $0xc] sm:$0xf]
  %v39 = vld [vmem:[%s2] sm:$0x1]
  %v41 = vperm.slane %v39, 0
  %v45 = vunpack.c.l.b16 %v33
  %v46 = vunpack.c.l.b16 %v34
  %v47 = vpack.c.b16 %v46, %v45
  %v52 = vunpack.c.l.b16 %v35
  %v53 = vunpack.c.l.b16 %v36
  %v54 = vunpack.c.l.b16 %v37
  %v55 = vunpack.c.l.b16 %v38
  %v56 = vpack.c.b16 %v53, %v52
  %v57 = vpack.c.b16 %v55, %v54
  %vm60 = vcmask 261120
  %v62 = vsel %vm60, %v47, 0
  %64 = vmatpush.bf16.msra.mxu0 0
  %65 = vmatpush.bf16.msra.mxu0 0
  %66 = vmatpush.bf16.msra.mxu0 0
  %67 = vmatpush.bf16.msra.mxu0 0
  %68 = vmatpush.bf16.msra.mxu0 0
  %69 = vmatpush.bf16.msra.mxu0 0
  %70 = vmatpush.bf16.msra.mxu0 %v57
  %71 = vmatpush.bf16.msra.mxu0 %v56
  %72 = vmatmul.bf16.gmra.mxu0 %v62
  %v73 = vpop.f32.mrf.mxu0
  %v74 = vadd.f32 %v41, %v73
  %v75 = vpop.f32.mrf.mxu0
  %v76 = vadd.f32 %v41, %v75
  %77 = vdwg.mxu0
  %v78 = vmax.f32 %v74, 0.0
  %v79 = vmax.f32 %v76, 0.0
  %v80 = vpack.c.bf16 %v79, %v78
  %v81 = vld [vmem:[%s3] sm:$0xf]
  %v82 = vld [vmem:[%s3 + $0x4] sm:$0xf]
  %v83 = vld [vmem:[%s3 + $0x8] sm:$0xf]
  %v84 = vld [vmem:[%s3 + $0xc] sm:$0xf]
  %v85 = vld [vmem:[%s3 + $0x10] sm:$0xf]
  %v86 = vld [vmem:[%s3 + $0x14] sm:$0xf]
  %v87 = vld [vmem:[%s3 + $0x18] sm:$0xf]
  %v88 = vld [vmem:[%s3 + $0x1c] sm:$0xf]
  %v89 = vld [vmem:[%s3 + $0x20] sm:$0xf]
  %v90 = vld [vmem:[%s3 + $0x24] sm:$0xf]
  %v91 = vld [vmem:[%s3 + $0x28] sm:$0xf]
  %v92 = vld [vmem:[%s3 + $0x2c] sm:$0xf]
  %v93 = vld [vmem:[%s3 + $0x30] sm:$0xf]
  %v94 = vld [vmem:[%s3 + $0x34] sm:$0xf]
  %v95 = vld [vmem:[%s3 + $0x38] sm:$0xf]
  %v96 = vld [vmem:[%s3 + $0x3c] sm:$0xf]
  %v97 = vld [vmem:[%s4] sm:$0x1]
  %v99 = vperm.slane %v97, 0
  %v117 = vunpack.c.l.b16 %v81
  %v118 = vunpack.c.l.b16 %v82
  %v119 = vunpack.c.l.b16 %v83
  %v120 = vunpack.c.l.b16 %v84
  %v121 = vunpack.c.l.b16 %v85
  %v122 = vunpack.c.l.b16 %v86
  %v123 = vunpack.c.l.b16 %v87
  %v124 = vunpack.c.l.b16 %v88
  %v125 = vunpack.c.l.b16 %v89
  %v126 = vunpack.c.l.b16 %v90
  %v127 = vunpack.c.l.b16 %v91
  %v128 = vunpack.c.l.b16 %v92
  %v129 = vunpack.c.l.b16 %v93
  %v130 = vunpack.c.l.b16 %v94
  %v131 = vunpack.c.l.b16 %v95
  %v132 = vunpack.c.l.b16 %v96
  %v133 = vpack.c.b16 %v118, %v117
  %v134 = vpack.c.b16 %v120, %v119
  %v135 = vpack.c.b16 %v122, %v121
  %v136 = vpack.c.b16 %v124, %v123
  %v137 = vpack.c.b16 %v126, %v125
  %v138 = vpack.c.b16 %v128, %v127
  %v139 = vpack.c.b16 %v130, %v129
  %v140 = vpack.c.b16 %v132, %v131
  %149 = vmatpush.bf16.msra.mxu0 %v140
  %150 = vmatpush.bf16.msra.mxu0 %v139
  %151 = vmatpush.bf16.msra.mxu0 %v138
  %152 = vmatpush.bf16.msra.mxu0 %v137
  %153 = vmatpush.bf16.msra.mxu0 %v136
  %154 = vmatpush.bf16.msra.mxu0 %v135
  %155 = vmatpush.bf16.msra.mxu0 %v134
  %156 = vmatpush.bf16.msra.mxu0 %v133
  %157 = vmatmul.bf16.gmra.mxu0 %v80
  %v158 = vpop.f32.mrf.mxu0
  %v159 = vadd.f32 %v99, %v158
  %v160 = vpop.f32.mrf.mxu0
  %v161 = vadd.f32 %v99, %v160
  %162 = vdwg.mxu0
  %v163 = vmax.f32 %v159, 0.0
  %v164 = vmax.f32 %v161, 0.0
  %v165 = vpack.c.bf16 %v164, %v163
  %v166 = vld [vmem:[%s5] sm:$0xf]
  %v167 = vld [vmem:[%s5 + $0x4] sm:$0xf]
  %v168 = vld [vmem:[%s5 + $0x8] sm:$0xf]
  %v169 = vld [vmem:[%s5 + $0xc] sm:$0xf]
  %v170 = vld [vmem:[%s5 + $0x10] sm:$0xf]
  %v171 = vld [vmem:[%s5 + $0x14] sm:$0xf]
  %v172 = vld [vmem:[%s5 + $0x18] sm:$0xf]
  %v173 = vld [vmem:[%s5 + $0x1c] sm:$0xf]
  %v174 = vld [vmem:[%s5 + $0x20] sm:$0xf]
  %v175 = vld [vmem:[%s5 + $0x24] sm:$0xf]
  %v176 = vld [vmem:[%s5 + $0x28] sm:$0xf]
  %v177 = vld [vmem:[%s5 + $0x2c] sm:$0xf]
  %v178 = vld [vmem:[%s5 + $0x30] sm:$0xf]
  %v179 = vld [vmem:[%s5 + $0x34] sm:$0xf]
  %v180 = vld [vmem:[%s5 + $0x38] sm:$0xf]
  %v181 = vld [vmem:[%s5 + $0x3c] sm:$0xf]
  %v182 = vld [vmem:[%s6] sm:$0x1]
  %v184 = vperm.slane %v182, 0
  %v202 = vunpack.c.l.b16 %v166
  %v203 = vunpack.c.l.b16 %v167
  %v204 = vunpack.c.l.b16 %v168
  %v205 = vunpack.c.l.b16 %v169
  %v206 = vunpack.c.l.b16 %v170
  %v207 = vunpack.c.l.b16 %v171
  %v208 = vunpack.c.l.b16 %v172
  %v209 = vunpack.c.l.b16 %v173
  %v210 = vunpack.c.l.b16 %v174
  %v211 = vunpack.c.l.b16 %v175
  %v212 = vunpack.c.l.b16 %v176
  %v213 = vunpack.c.l.b16 %v177
  %v214 = vunpack.c.l.b16 %v178
  %v215 = vunpack.c.l.b16 %v179
  %v216 = vunpack.c.l.b16 %v180
  %v217 = vunpack.c.l.b16 %v181
  %v218 = vpack.c.b16 %v203, %v202
  %v219 = vpack.c.b16 %v205, %v204
  %v220 = vpack.c.b16 %v207, %v206
  %v221 = vpack.c.b16 %v209, %v208
  %v222 = vpack.c.b16 %v211, %v210
  %v223 = vpack.c.b16 %v213, %v212
  %v224 = vpack.c.b16 %v215, %v214
  %v225 = vpack.c.b16 %v217, %v216
  %234 = vmatpush.bf16.msra.mxu0 %v225
  %235 = vmatpush.bf16.msra.mxu0 %v224
  %236 = vmatpush.bf16.msra.mxu0 %v223
  %237 = vmatpush.bf16.msra.mxu0 %v222
  %238 = vmatpush.bf16.msra.mxu0 %v221
  %239 = vmatpush.bf16.msra.mxu0 %v220
  %240 = vmatpush.bf16.msra.mxu0 %v219
  %241 = vmatpush.bf16.msra.mxu0 %v218
  %242 = vmatmul.bf16.gmra.mxu0 %v165
  %v243 = vpop.f32.mrf.mxu0
  %v244 = vadd.f32 %v184, %v243
  %v245 = vpop.f32.mrf.mxu0
  %v246 = vadd.f32 %v184, %v245
  %247 = vdwg.mxu0
  %v248 = vmax.f32 %v244, 0.0
  %v249 = vmax.f32 %v246, 0.0
  %v250 = vpack.c.bf16 %v249, %v248
  %v251 = vld [vmem:[%s7] sm:$0xf]
  %v252 = vld [vmem:[%s7 + $0x4] sm:$0xf]
  %v253 = vld [vmem:[%s7 + $0x8] sm:$0xf]
  %v254 = vld [vmem:[%s7 + $0xc] sm:$0xf]
  %v255 = vld [vmem:[%s7 + $0x10] sm:$0xf]
  %v256 = vld [vmem:[%s7 + $0x14] sm:$0xf]
  %v257 = vld [vmem:[%s7 + $0x18] sm:$0xf]
  %v258 = vld [vmem:[%s7 + $0x1c] sm:$0xf]
  %v259 = vld [vmem:[%s7 + $0x20] sm:$0xf]
  %v260 = vld [vmem:[%s7 + $0x24] sm:$0xf]
  %v261 = vld [vmem:[%s7 + $0x28] sm:$0xf]
  %v262 = vld [vmem:[%s7 + $0x2c] sm:$0xf]
  %v263 = vld [vmem:[%s7 + $0x30] sm:$0xf]
  %v264 = vld [vmem:[%s7 + $0x34] sm:$0xf]
  %v265 = vld [vmem:[%s7 + $0x38] sm:$0xf]
  %v266 = vld [vmem:[%s7 + $0x3c] sm:$0xf]
  %v267 = vld [vmem:[%s8] sm:$0x1]
  %v269 = vperm.slane %v267, 0
  %v287 = vunpack.c.l.b16 %v251
  %v288 = vunpack.c.l.b16 %v252
  %v289 = vunpack.c.l.b16 %v253
  %v290 = vunpack.c.l.b16 %v254
  %v291 = vunpack.c.l.b16 %v255
  %v292 = vunpack.c.l.b16 %v256
  %v293 = vunpack.c.l.b16 %v257
  %v294 = vunpack.c.l.b16 %v258
  %v295 = vunpack.c.l.b16 %v259
  %v296 = vunpack.c.l.b16 %v260
  %v297 = vunpack.c.l.b16 %v261
  %v298 = vunpack.c.l.b16 %v262
  %v299 = vunpack.c.l.b16 %v263
  %v300 = vunpack.c.l.b16 %v264
  %v301 = vunpack.c.l.b16 %v265
  %v302 = vunpack.c.l.b16 %v266
  %v303 = vpack.c.b16 %v288, %v287
  %v304 = vpack.c.b16 %v290, %v289
  %v305 = vpack.c.b16 %v292, %v291
  %v306 = vpack.c.b16 %v294, %v293
  %v307 = vpack.c.b16 %v296, %v295
  %v308 = vpack.c.b16 %v298, %v297
  %v309 = vpack.c.b16 %v300, %v299
  %v310 = vpack.c.b16 %v302, %v301
  %319 = vmatpush.bf16.msra.mxu0 %v310
  %320 = vmatpush.bf16.msra.mxu0 %v309
  %321 = vmatpush.bf16.msra.mxu0 %v308
  %322 = vmatpush.bf16.msra.mxu0 %v307
  %323 = vmatpush.bf16.msra.mxu0 %v306
  %324 = vmatpush.bf16.msra.mxu0 %v305
  %325 = vmatpush.bf16.msra.mxu0 %v304
  %326 = vmatpush.bf16.msra.mxu0 %v303
  %327 = vmatmul.bf16.gmra.mxu0 %v250
  %v328 = vpop.f32.mrf.mxu0
  %v329 = vadd.f32 %v269, %v328
  %v330 = vpop.f32.mrf.mxu0
  %v331 = vadd.f32 %v269, %v330
  %332 = vdwg.mxu0
  %333 = vst [vmem:[%s9] sm:$0xff] %v329
  %334 = vst [vmem:[%s9 + $0x8] sm:$0xff] %v331
  // Predicated region
  $region38: #{mlp_forward.1} parent=0 // pred_check
    _
  $region39: #{mlp_forward.1} parent=0 // pred_check_branch
    %336 = sbr.rel (0) target = $region41
  $region40: #{mlp_forward.1} parent=0 // pred_region
    _
  $region41: #{mlp_forward.1} parent=0 // pred_fallthru
    _
  // Predicated region
  $region42: #{mlp_forward.1} parent=0 // pred_check
    _
  $region43: #{mlp_forward.1} parent=0 // pred_check_branch
    %338 = sbr.rel (0) target = $region45
  $region44: #{mlp_forward.1} parent=0 // pred_region
    _
  $region45: #{mlp_forward.1} parent=0 // pred_fallthru
    _

</llo_original>
